<compile_context>
chip_gen: v6e
topology: v6e:2x2x1
jax: 0.10.0
libtpu: 0.0.40
codegen_flags: <defaults>
</compile_context>

<pallas_src>
import functools

import numpy as np
import jax
import jax.numpy as jnp
from jax.experimental import pallas as pl
from jax.experimental.pallas import tpu as pltpu


# ---------------------------------------------------------------------------
# Deterministic parameter construction (mirrors the module's __init__).
# ---------------------------------------------------------------------------
def _hz_to_mel(f):
    return 1127.0 * np.log1p(np.asarray(f, dtype=np.float64) / 700.0)


def _mel_to_hz(m):
    return 700.0 * np.expm1(np.asarray(m, dtype=np.float64) / 1127.0)


def make_mel_filterbank(n_channel, fft_length, sample_rate, f_min=0.0, f_max=None):
    """HTK-style triangular mel filter bank (use_power=True path).

    Returns H with shape (L/2+1, C) and the C+1 center frequencies in Hz.
    """
    if f_max is None:
        f_max = sample_rate / 2
    n_bin = fft_length // 2 + 1
    mel_min, mel_max = _hz_to_mel(f_min), _hz_to_mel(f_max)
    seed = np.arange(1, n_channel + 2, dtype=np.float64)
    center_mel = mel_min + (mel_max - mel_min) * seed / (n_channel + 1)  # (C+1,)
    center_hz = _mel_to_hz(center_mel)
    bounds = np.concatenate(([mel_min], center_mel))                     # (C+2,)

    lower_bin = max(1, int(f_min / sample_rate * fft_length + 1.5))
    upper_bin = min(fft_length // 2, int(f_max / sample_rate * fft_length + 0.5))
    bin_mel = _hz_to_mel(np.arange(n_bin) * sample_rate / fft_length)

    H = np.zeros((n_bin, n_channel), dtype=np.float64)
    for k in range(lower_bin, upper_bin + 1):
        m = bin_mel[k]
        i = int(np.clip(np.searchsorted(bounds, m, side="right") - 1, 0, n_channel))
        w = (bounds[i + 1] - m) / (bounds[i + 1] - bounds[i])
        if 1 <= i <= n_channel:
            H[k, i - 1] += w
        if i + 1 <= n_channel:
            H[k, i] += 1.0 - w
    return H, center_hz


def make_hfft_matrix(n_channel, plp_order):
    """Matrix W of shape (C, M+1) such that, for y with shape (B, C):

        torch.fft.hfft(replicate1(y), norm='forward')[..., :M+1] == y @ W
    """
    n_rep = n_channel + 2          # length after replicate1
    n = 2 * (n_rep - 1)            # Hermitian-extended length
    j = np.arange(n_rep, dtype=np.float64)[:, None]
    k = np.arange(plp_order + 1, dtype=np.float64)[None, :]
    Wc = 2.0 * np.cos(2.0 * np.pi * j * k / n) / n
    Wc[0, :] = 1.0 / n
    Wc[-1, :] = np.cos(np.pi * k[0, :]) / n        # (-1)^k / n
    # fold replicate1 (edge replication) into the matrix
    W = Wc[1:-1].copy()
    W[0] += Wc[0]
    W[-1] += Wc[-1]
    return W


# ---------------------------------------------------------------------------
# Pallas kernel: fbank(+equal loudness) -> compression -> replicate1+hfft
#                -> Levinson-Durbin -> LPC->cepstrum -> liftering -> drop C0.
# ---------------------------------------------------------------------------
def plp_kernel(x_ref, hT_ref, wT_ref, floor_ref, out_ref, *,
               plp_order, compression_factor, lift_tail):
    LANE = 128
    M = plp_order
    nb = out_ref.shape[2]                       # lane-blocks per tile (bb // 128)

    # --- mel filter bank (use_power=True) with equal loudness folded in -----
    # x_ref keeps the natural HBM layout (frames, bins); contract over the bin
    # axis so the result lands frames-on-lanes with no wrapper transpose of x:
    #   y[c, b] = sum_k (H*eql)[k, c] * x[b, k]
    x = x_ref[...]                                                    # (bb, n_bin)
    y = jax.lax.dot_general(hT_ref[...], x, (((1,), (1,)), ((), ())),
                            preferred_element_type=jnp.float32)       # (C, bb)
    # Positive floor clamp:  max(x@H, floor)*eql == max(x@(H*eql), floor*eql).
    # It also guarantees log() below never sees <=0, even on the garbage lanes
    # of a ragged last block (garbage stays lane-local and is discarded).
    y = jnp.maximum(y, floor_ref[...])                                # lane bcast
    # amplitude compression y ** cf  (exp/log run on the EUP slot)
    y = jnp.exp(compression_factor * jnp.log(y))
    # NOTE: the fbank energy E is only needed for out_format in ('yE','ycE');
    # out_format='y' (default) never uses it, so it is not materialized.

    # --- replicate1 + hfft(norm='forward')[..., :M+1] as one matmul ---------
    r2 = jnp.dot(wT_ref[...], y, preferred_element_type=jnp.float32)  # (M+1, bb)

    # --- densify: repack each (1, bb) row into a (nb, 128) tile so the ------
    # Levinson / lpc2c recursion state is 8x denser in vregs (no spills).
    rrows = [
        jnp.concatenate(
            [r2[i:i + 1, j * LANE:(j + 1) * LANE] for j in range(nb)], axis=0)
        for i in range(M + 1)
    ]                                                                 # each (nb, 128)

    def _recip(v):
        # EUP approximate reciprocal + one Newton step: keeps the divide off
        # the VALU while restoring ~f32 accuracy for the Levinson recursion.
        inv = pl.reciprocal(v, approx=True)
        return inv * (2.0 - v * inv)

    # --- Levinson-Durbin: r -> LPC coefficients a_1..a_M, prediction error e
    # Symmetric pairwise a-update keeps the live row count minimal.
    e = rrows[0]
    a = [None] * (M + 1)
    for i in range(1, M + 1):
        acc = rrows[i]
        for j in range(1, i):
            acc = acc + a[j] * rrows[i - j]
        km = -acc * _recip(jnp.maximum(e, 1e-30))    # guard degenerate spectra
        for j in range(1, (i + 1) // 2):
            aj, aij = a[j], a[i - j]
            a[j] = aj + km * aij
            a[i - j] = aij + km * aj
        if i % 2 == 0:
            h = i // 2
            a[h] = a[h] + km * a[h]
        a[i] = km
        e = e * (1.0 - km * km)

    # --- LPC -> cepstrum, liftering, per-row stores (frees vregs early) -----
    # C0 (= 0.5*log e) is dropped for out_format='y', so it is never computed.
    # TODO(synk): diffsptk's lpc2c goes through mgc2mgc's n_fft=512 FFT
    # approximation; the exact (n_fft -> inf) lpc2c recursion is used here.
    c = [None] * (M + 1)
    for m in range(1, M + 1):
        s = -a[m]
        for kk in range(1, m):
            s = s - (kk / m) * c[kk] * a[m - kk]
        c[m] = s
        out_ref[m - 1, 0] = s * lift_tail[m - 1]     # (nb, 128) unmasked store


# ---------------------------------------------------------------------------
# Wrapper: tiling, grid, and the (tiny) output relayout.
# ---------------------------------------------------------------------------
def _pick_bb(batch, n_bin, M, block_b, vmem_budget):
    LANE = 128
    lane_batch = max(LANE, -(-batch // LANE) * LANE)
    # double-buffered x tile dominates the VMEM footprint
    per_frame = 2 * 4 * n_bin + 2 * 4 * M + 64
    cap = max(LANE, (vmem_budget // per_frame) // LANE * LANE)
    bb = min(block_b, cap, lane_batch)
    # Keep >= 2 grid steps when the batch allows it: on v7x the "parallel"
    # axis shards across both TensorCores; the extra step is ~0.35us elsewhere.
    if lane_batch >= 2 * LANE and lane_batch <= bb:
        bb = -(-(lane_batch // 2) // LANE) * LANE
    return bb


def plp(x, hT_eql, wT, floor_vec, *, plp_order, compression_factor, lift_tail,
        block_b=2048, vmem_budget=16 << 20):
    """x: (..., L/2+1) power spectrum -> (..., M) PLP (out_format='y')."""
    lead = x.shape[:-1]
    n_bin = x.shape[-1]
    batch = int(np.prod(lead)) if lead else 1
    x2 = jnp.reshape(x, (batch, n_bin)).astype(jnp.float32)

    n_channel = hT_eql.shape[0]
    M = plp_order
    LANE = 128

    bb = _pick_bb(batch, n_bin, M, block_b, vmem_budget)
    grid = -(-batch // bb)        # ragged last block: OOB lanes discarded below
    nb = bb // LANE

    kernel = functools.partial(
        plp_kernel,
        plp_order=M,
        compression_factor=float(compression_factor),
        lift_tail=tuple(float(v) for v in lift_tail),
    )

    cost = pl.CostEstimate(
        flops=2 * grid * bb * n_channel * (n_bin + M + 1) + 6 * grid * bb * M * M,
        transcendentals=grid * bb * (2 * n_channel + M),
        bytes_accessed=4 * (grid * bb * (n_bin + M)
                            + n_channel * (n_bin + M + 2)),
    )

    out4 = pl.pallas_call(
        kernel,
        out_shape=jax.ShapeDtypeStruct((M, grid, nb, LANE), jnp.float32),
        grid_spec=pltpu.PrefetchScalarGridSpec(
            num_scalar_prefetch=0,
            grid=(grid,),
            in_specs=[
                pl.BlockSpec((bb, n_bin), lambda i: (i, 0)),          # x tile, natural layout
                pl.BlockSpec((n_channel, n_bin), lambda i: (0, 0)),   # (H*eql)^T
                pl.BlockSpec((M + 1, n_channel), lambda i: (0, 0)),   # hfft^T
                pl.BlockSpec((n_channel, 1), lambda i: (0, 0)),       # floor*eql
            ],
            out_specs=pl.BlockSpec((M, 1, nb, LANE), lambda i: (0, i, 0, 0)),
        ),
        compiler_params=pltpu.CompilerParams(
            dimension_semantics=("parallel",),
            vmem_limit_bytes=32 * 1024 * 1024,
        ),
        cost_estimate=cost,
    )(x2, hT_eql, wT, floor_vec)

    # Output is tiny (M x B): this wrapper transpose is negligible next to the
    # x stream the kernel reads; the reshape below is contiguous.
    out = jnp.transpose(out4.reshape(M, grid * bb))[:batch]          # (B, M)
    return jnp.reshape(out, lead + (M,))


# ---------------------------------------------------------------------------
# Pure-numpy (float64) reference of the same math, for validation.
# ---------------------------------------------------------------------------
def plp_reference(x, H, eql, W, lift1, floor, cf):
    fb = np.maximum(x @ H, floor)
    y = (fb * eql) ** cf
    r = y @ W
    B, Mp1 = r.shape
    M = Mp1 - 1
    a = np.zeros((B, M + 1))
    e = r[:, 0].copy()
    for i in range(1, M + 1):
        acc = r[:, i].copy()
        for j in range(1, i):
            acc += a[:, j] * r[:, i - j]
        k = -acc / e
        new_a = a.copy()
        new_a[:, i] = k
        for j in range(1, i):
            new_a[:, j] = a[:, j] + k * a[:, i - j]
        a = new_a
        e = e * (1.0 - k * k)
    c = np.zeros((B, M + 1))
    c[:, 0] = np.log(np.sqrt(e))
    for m in range(1, M + 1):
        s = -a[:, m]
        for kk in range(1, m):
            s = s - (kk / m) * c[:, kk] * a[:, m - kk]
        c[:, m] = s
    return c[:, 1:] * lift1


if __name__ == "__main__":
    # PLP(4, 8, 32, 8000) as in the module docstring example.
    plp_order = 4
    n_channel = 8
    fft_length = 32
    sample_rate = 8000
    lifter = 1
    compression_factor = 0.33
    floor = 1e-5
    lead = (2, 150)   # 300 frames: exercises a 2-step "parallel" grid with a
                      # ragged last block (no wrapper pad) and multi-dim lead.

    H, center_hz = make_mel_filterbank(n_channel, fft_length, sample_rate)
    W = make_hfft_matrix(n_channel, plp_order)
    f = center_hz[:-1] ** 2
    eql = (f / (f + 160000.0)) ** 2 * (f + 1440000.0) / (f + 9610000.0)   # (C,)
    m = np.arange(plp_order + 1, dtype=np.float64)
    lift = 1.0 + lifter / 2.0 * np.sin(np.pi / lifter * m)
    lift[0] = 2.0

    # Fold the equal-loudness curve into the filter bank and the floor clamp,
    # and pre-transpose the small constant matrices for the lane-dense layout.
    hT_eql = (H * eql[None, :]).T                    # (C, L/2+1)
    wT = W.T                                         # (M+1, C)
    floor_vec = (floor * eql).reshape(n_channel, 1)  # (C, 1)

    key = jax.random.PRNGKey(0)
    v = jax.random.normal(key, lead + (fft_length // 2 + 1,), dtype=jnp.float32)
    x = v * v + 0.1   # synthetic positive power spectrum, shape (..., L/2+1)

    out = plp(
        x,
        jnp.asarray(hT_eql, jnp.float32),
        jnp.asarray(wT, jnp.float32),
        jnp.asarray(floor_vec, jnp.float32),
        plp_order=plp_order,
        compression_factor=compression_factor,
        lift_tail=lift[1:],
    )
    out = jax.block_until_ready(out)

    x_flat = np.asarray(x, np.float64).reshape(-1, fft_length // 2 + 1)
    ref = plp_reference(x_flat, H, eql, W, lift[1:], floor, compression_factor)
    assert out.shape == lead + (plp_order,)
    np.testing.assert_allclose(
        np.asarray(out, np.float64).reshape(-1, plp_order), ref,
        rtol=1e-3, atol=1e-3)
    print("KERNEL_OK")
</pallas_src>

<mosaic_0001>
module attributes {stable_mosaic.version = 11 : i64} {
  func.func @plp_kernel(%arg0: i32, %arg1: memref<256x17xf32, #tpu.memory_space<vmem>>, %arg2: memref<8x17xf32, #tpu.memory_space<vmem>>, %arg3: memref<5x8xf32, #tpu.memory_space<vmem>>, %arg4: memref<8x1xf32, #tpu.memory_space<vmem>>, %arg5: memref<4x1x2x128xf32, #tpu.memory_space<vmem>>) attributes {dimension_semantics = [#tpu.dimension_semantics<parallel>], iteration_bounds = array<i64: 2>, scalar_prefetch = 0 : i64, scratch_operands = 0 : i64, tpu.core_type = #tpu.core_type<tc>, window_params = [{transform_indices = @transform_0, window_bounds = array<i64: 256, 17>}, {pipeline_mode = #tpu.pipeline_mode<synchronous>, transform_indices = @transform_1, window_bounds = array<i64: 8, 17>}, {pipeline_mode = #tpu.pipeline_mode<synchronous>, transform_indices = @transform_2, window_bounds = array<i64: 5, 8>}, {pipeline_mode = #tpu.pipeline_mode<synchronous>, transform_indices = @transform_3, window_bounds = array<i64: 8, 1>}, {transform_indices = @transform_4, window_bounds = array<i64: 4, 1, 2, 128>}]} {
    %c0 = arith.constant 0 : index
    %c0_0 = arith.constant 0 : index
    %0 = vector.load %arg1[%c0, %c0_0] : memref<256x17xf32, #tpu.memory_space<vmem>>, vector<256x17xf32>
    %c0_1 = arith.constant 0 : index
    %c0_2 = arith.constant 0 : index
    %1 = vector.load %arg2[%c0_1, %c0_2] : memref<8x17xf32, #tpu.memory_space<vmem>>, vector<8x17xf32>
    %cst = arith.constant dense<0.000000e+00> : vector<8x256xf32>
    %2 = tpu.matmul %1, %0, %cst {dimension_numbers = #tpu.dot_dimension_numbers<[1], [1], [0], [0], [0, 0, 1, 0], [], []>} : vector<8x17xf32>, vector<256x17xf32>, vector<8x256xf32> -> vector<8x256xf32>
    %c0_3 = arith.constant 0 : index
    %c0_4 = arith.constant 0 : index
    %3 = vector.load %arg4[%c0_3, %c0_4] : memref<8x1xf32, #tpu.memory_space<vmem>>, vector<8x1xf32>
    %4 = vector.broadcast %3 : vector<8x1xf32> to vector<8x256xf32>
    %5 = arith.maximumf %2, %4 : vector<8x256xf32>
    %6 = math.log %5 : vector<8x256xf32>
    %cst_5 = arith.constant 3.300000e-01 : f32
    %7 = vector.broadcast %cst_5 : f32 to vector<8x256xf32>
    %8 = arith.mulf %7, %6 : vector<8x256xf32>
    %9 = math.exp %8 : vector<8x256xf32>
    %c0_6 = arith.constant 0 : index
    %c0_7 = arith.constant 0 : index
    %10 = vector.load %arg3[%c0_6, %c0_7] : memref<5x8xf32, #tpu.memory_space<vmem>>, vector<5x8xf32>
    %cst_8 = arith.constant dense<0.000000e+00> : vector<5x256xf32>
    %11 = tpu.matmul %10, %9, %cst_8 {dimension_numbers = #tpu.dot_dimension_numbers<[1], [0], [0], [1], [0, 0, 1, 1], [], []>} : vector<5x8xf32>, vector<8x256xf32>, vector<5x256xf32> -> vector<5x256xf32>
    %12 = vector.extract_strided_slice %11 {offsets = [0, 0], sizes = [1, 128], strides = [1, 1]} : vector<5x256xf32> to vector<1x128xf32>
    %13 = vector.extract_strided_slice %11 {offsets = [0, 128], sizes = [1, 128], strides = [1, 1]} : vector<5x256xf32> to vector<1x128xf32>
    %14 = tpu.concatenate %12, %13 in 0 : vector<1x128xf32>, vector<1x128xf32> -> vector<2x128xf32>
    %15 = vector.extract_strided_slice %11 {offsets = [1, 0], sizes = [1, 128], strides = [1, 1]} : vector<5x256xf32> to vector<1x128xf32>
    %16 = vector.extract_strided_slice %11 {offsets = [1, 128], sizes = [1, 128], strides = [1, 1]} : vector<5x256xf32> to vector<1x128xf32>
    %17 = tpu.concatenate %15, %16 in 0 : vector<1x128xf32>, vector<1x128xf32> -> vector<2x128xf32>
    %18 = vector.extract_strided_slice %11 {offsets = [2, 0], sizes = [1, 128], strides = [1, 1]} : vector<5x256xf32> to vector<1x128xf32>
    %19 = vector.extract_strided_slice %11 {offsets = [2, 128], sizes = [1, 128], strides = [1, 1]} : vector<5x256xf32> to vector<1x128xf32>
    %20 = tpu.concatenate %18, %19 in 0 : vector<1x128xf32>, vector<1x128xf32> -> vector<2x128xf32>
    %21 = vector.extract_strided_slice %11 {offsets = [3, 0], sizes = [1, 128], strides = [1, 1]} : vector<5x256xf32> to vector<1x128xf32>
    %22 = vector.extract_strided_slice %11 {offsets = [3, 128], sizes = [1, 128], strides = [1, 1]} : vector<5x256xf32> to vector<1x128xf32>
    %23 = tpu.concatenate %21, %22 in 0 : vector<1x128xf32>, vector<1x128xf32> -> vector<2x128xf32>
    %24 = vector.extract_strided_slice %11 {offsets = [4, 0], sizes = [1, 128], strides = [1, 1]} : vector<5x256xf32> to vector<1x128xf32>
    %25 = vector.extract_strided_slice %11 {offsets = [4, 128], sizes = [1, 128], strides = [1, 1]} : vector<5x256xf32> to vector<1x128xf32>
    %26 = tpu.concatenate %24, %25 in 0 : vector<1x128xf32>, vector<1x128xf32> -> vector<2x128xf32>
    %cst_9 = arith.constant 0.000000e+00 : f32
    %27 = vector.broadcast %cst_9 : f32 to vector<2x128xf32>
    %28 = arith.subf %27, %17 : vector<2x128xf32>
    %cst_10 = arith.constant 1.000000e-30 : f32
    %29 = vector.broadcast %cst_10 : f32 to vector<2x128xf32>
    %30 = arith.maximumf %14, %29 : vector<2x128xf32>
    %31 = tpu.reciprocal %30 {approx = true} : vector<2x128xf32> -> vector<2x128xf32>
    %32 = arith.mulf %30, %31 : vector<2x128xf32>
    %cst_11 = arith.constant 2.000000e+00 : f32
    %33 = vector.broadcast %cst_11 : f32 to vector<2x128xf32>
    %34 = arith.subf %33, %32 : vector<2x128xf32>
    %35 = arith.mulf %31, %34 : vector<2x128xf32>
    %36 = arith.mulf %28, %35 : vector<2x128xf32>
    %37 = arith.mulf %36, %36 : vector<2x128xf32>
    %cst_12 = arith.constant 1.000000e+00 : f32
    %38 = vector.broadcast %cst_12 : f32 to vector<2x128xf32>
    %39 = arith.subf %38, %37 : vector<2x128xf32>
    %40 = arith.mulf %14, %39 : vector<2x128xf32>
    %41 = arith.mulf %36, %17 : vector<2x128xf32>
    %42 = arith.addf %20, %41 : vector<2x128xf32>
    %cst_13 = arith.constant 0.000000e+00 : f32
    %43 = vector.broadcast %cst_13 : f32 to vector<2x128xf32>
    %44 = arith.subf %43, %42 : vector<2x128xf32>
    %cst_14 = arith.constant 1.000000e-30 : f32
    %45 = vector.broadcast %cst_14 : f32 to vector<2x128xf32>
    %46 = arith.maximumf %40, %45 : vector<2x128xf32>
    %47 = tpu.reciprocal %46 {approx = true} : vector<2x128xf32> -> vector<2x128xf32>
    %48 = arith.mulf %46, %47 : vector<2x128xf32>
    %cst_15 = arith.constant 2.000000e+00 : f32
    %49 = vector.broadcast %cst_15 : f32 to vector<2x128xf32>
    %50 = arith.subf %49, %48 : vector<2x128xf32>
    %51 = arith.mulf %47, %50 : vector<2x128xf32>
    %52 = arith.mulf %44, %51 : vector<2x128xf32>
    %53 = arith.mulf %52, %36 : vector<2x128xf32>
    %54 = arith.addf %36, %53 : vector<2x128xf32>
    %55 = arith.mulf %52, %52 : vector<2x128xf32>
    %cst_16 = arith.constant 1.000000e+00 : f32
    %56 = vector.broadcast %cst_16 : f32 to vector<2x128xf32>
    %57 = arith.subf %56, %55 : vector<2x128xf32>
    %58 = arith.mulf %40, %57 : vector<2x128xf32>
    %59 = arith.mulf %54, %20 : vector<2x128xf32>
    %60 = arith.addf %23, %59 : vector<2x128xf32>
    %61 = arith.mulf %52, %17 : vector<2x128xf32>
    %62 = arith.addf %60, %61 : vector<2x128xf32>
    %cst_17 = arith.constant 0.000000e+00 : f32
    %63 = vector.broadcast %cst_17 : f32 to vector<2x128xf32>
    %64 = arith.subf %63, %62 : vector<2x128xf32>
    %cst_18 = arith.constant 1.000000e-30 : f32
    %65 = vector.broadcast %cst_18 : f32 to vector<2x128xf32>
    %66 = arith.maximumf %58, %65 : vector<2x128xf32>
    %67 = tpu.reciprocal %66 {approx = true} : vector<2x128xf32> -> vector<2x128xf32>
    %68 = arith.mulf %66, %67 : vector<2x128xf32>
    %cst_19 = arith.constant 2.000000e+00 : f32
    %69 = vector.broadcast %cst_19 : f32 to vector<2x128xf32>
    %70 = arith.subf %69, %68 : vector<2x128xf32>
    %71 = arith.mulf %67, %70 : vector<2x128xf32>
    %72 = arith.mulf %64, %71 : vector<2x128xf32>
    %73 = arith.mulf %72, %52 : vector<2x128xf32>
    %74 = arith.addf %54, %73 : vector<2x128xf32>
    %75 = arith.mulf %72, %54 : vector<2x128xf32>
    %76 = arith.addf %52, %75 : vector<2x128xf32>
    %77 = arith.mulf %72, %72 : vector<2x128xf32>
    %cst_20 = arith.constant 1.000000e+00 : f32
    %78 = vector.broadcast %cst_20 : f32 to vector<2x128xf32>
    %79 = arith.subf %78, %77 : vector<2x128xf32>
    %80 = arith.mulf %58, %79 : vector<2x128xf32>
    %81 = arith.mulf %74, %23 : vector<2x128xf32>
    %82 = arith.addf %26, %81 : vector<2x128xf32>
    %83 = arith.mulf %76, %20 : vector<2x128xf32>
    %84 = arith.addf %82, %83 : vector<2x128xf32>
    %85 = arith.mulf %72, %17 : vector<2x128xf32>
    %86 = arith.addf %84, %85 : vector<2x128xf32>
    %cst_21 = arith.constant 0.000000e+00 : f32
    %87 = vector.broadcast %cst_21 : f32 to vector<2x128xf32>
    %88 = arith.subf %87, %86 : vector<2x128xf32>
    %cst_22 = arith.constant 1.000000e-30 : f32
    %89 = vector.broadcast %cst_22 : f32 to vector<2x128xf32>
    %90 = arith.maximumf %80, %89 : vector<2x128xf32>
    %91 = tpu.reciprocal %90 {approx = true} : vector<2x128xf32> -> vector<2x128xf32>
    %92 = arith.mulf %90, %91 : vector<2x128xf32>
    %cst_23 = arith.constant 2.000000e+00 : f32
    %93 = vector.broadcast %cst_23 : f32 to vector<2x128xf32>
    %94 = arith.subf %93, %92 : vector<2x128xf32>
    %95 = arith.mulf %91, %94 : vector<2x128xf32>
    %96 = arith.mulf %88, %95 : vector<2x128xf32>
    %97 = arith.mulf %96, %72 : vector<2x128xf32>
    %98 = arith.addf %74, %97 : vector<2x128xf32>
    %99 = arith.mulf %96, %74 : vector<2x128xf32>
    %100 = arith.addf %72, %99 : vector<2x128xf32>
    %101 = arith.mulf %96, %76 : vector<2x128xf32>
    %102 = arith.addf %76, %101 : vector<2x128xf32>
    %cst_24 = arith.constant 0.000000e+00 : f32
    %103 = vector.broadcast %cst_24 : f32 to vector<2x128xf32>
    %104 = arith.subf %103, %98 : vector<2x128xf32>
    %cst_25 = arith.constant 1.000000e+00 : f32
    %105 = vector.broadcast %cst_25 : f32 to vector<2x128xf32>
    %106 = arith.mulf %104, %105 : vector<2x128xf32>
    %c0_26 = arith.constant 0 : index
    %c0_27 = arith.constant 0 : index
    %c0_28 = arith.constant 0 : index
    %c0_29 = arith.constant 0 : index
    %107 = vector.load %arg5[%c0_26, %c0_27, %c0_28, %c0_29] : memref<4x1x2x128xf32, #tpu.memory_space<vmem>>, vector<1x1x2x128xf32>
    %108 = vector.shape_cast %107 : vector<1x1x2x128xf32> to vector<2x128xf32>
    %109 = vector.shape_cast %106 : vector<2x128xf32> to vector<1x1x2x128xf32>
    tpu.vector_store %arg5[%c0_26, %c0_27, %c0_28, %c0_29], %109 {strides = array<i32>} : memref<4x1x2x128xf32, #tpu.memory_space<vmem>>, vector<1x1x2x128xf32>,
    %cst_30 = arith.constant 0.000000e+00 : f32
    %110 = vector.broadcast %cst_30 : f32 to vector<2x128xf32>
    %111 = arith.subf %110, %102 : vector<2x128xf32>
    %cst_31 = arith.constant 5.000000e-01 : f32
    %112 = vector.broadcast %cst_31 : f32 to vector<2x128xf32>
    %113 = arith.mulf %112, %104 : vector<2x128xf32>
    %114 = arith.mulf %113, %98 : vector<2x128xf32>
    %115 = arith.subf %111, %114 : vector<2x128xf32>
    %cst_32 = arith.constant 1.000000e+00 : f32
    %116 = vector.broadcast %cst_32 : f32 to vector<2x128xf32>
    %117 = arith.mulf %115, %116 : vector<2x128xf32>
    %c1 = arith.constant 1 : index
    %c0_33 = arith.constant 0 : index
    %c0_34 = arith.constant 0 : index
    %c0_35 = arith.constant 0 : index
    %118 = vector.load %arg5[%c1, %c0_33, %c0_34, %c0_35] : memref<4x1x2x128xf32, #tpu.memory_space<vmem>>, vector<1x1x2x128xf32>
    %119 = vector.shape_cast %118 : vector<1x1x2x128xf32> to vector<2x128xf32>
    %120 = vector.shape_cast %117 : vector<2x128xf32> to vector<1x1x2x128xf32>
    tpu.vector_store %arg5[%c1, %c0_33, %c0_34, %c0_35], %120 {strides = array<i32>} : memref<4x1x2x128xf32, #tpu.memory_space<vmem>>, vector<1x1x2x128xf32>,
    %cst_36 = arith.constant 0.000000e+00 : f32
    %121 = vector.broadcast %cst_36 : f32 to vector<2x128xf32>
    %122 = arith.subf %121, %100 : vector<2x128xf32>
    %cst_37 = arith.constant 0.333333343 : f32
    %123 = vector.broadcast %cst_37 : f32 to vector<2x128xf32>
    %124 = arith.mulf %123, %104 : vector<2x128xf32>
    %125 = arith.mulf %124, %102 : vector<2x128xf32>
    %126 = arith.subf %122, %125 : vector<2x128xf32>
    %cst_38 = arith.constant 0.666666686 : f32
    %127 = vector.broadcast %cst_38 : f32 to vector<2x128xf32>
    %128 = arith.mulf %127, %115 : vector<2x128xf32>
    %129 = arith.mulf %128, %98 : vector<2x128xf32>
    %130 = arith.subf %126, %129 : vector<2x128xf32>
    %cst_39 = arith.constant 1.000000e+00 : f32
    %131 = vector.broadcast %cst_39 : f32 to vector<2x128xf32>
    %132 = arith.mulf %130, %131 : vector<2x128xf32>
    %c2 = arith.constant 2 : index
    %c0_40 = arith.constant 0 : index
    %c0_41 = arith.constant 0 : index
    %c0_42 = arith.constant 0 : index
    %133 = vector.load %arg5[%c2, %c0_40, %c0_41, %c0_42] : memref<4x1x2x128xf32, #tpu.memory_space<vmem>>, vector<1x1x2x128xf32>
    %134 = vector.shape_cast %133 : vector<1x1x2x128xf32> to vector<2x128xf32>
    %135 = vector.shape_cast %132 : vector<2x128xf32> to vector<1x1x2x128xf32>
    tpu.vector_store %arg5[%c2, %c0_40, %c0_41, %c0_42], %135 {strides = array<i32>} : memref<4x1x2x128xf32, #tpu.memory_space<vmem>>, vector<1x1x2x128xf32>,
    %cst_43 = arith.constant 0.000000e+00 : f32
    %136 = vector.broadcast %cst_43 : f32 to vector<2x128xf32>
    %137 = arith.subf %136, %96 : vector<2x128xf32>
    %cst_44 = arith.constant 2.500000e-01 : f32
    %138 = vector.broadcast %cst_44 : f32 to vector<2x128xf32>
    %139 = arith.mulf %138, %104 : vector<2x128xf32>
    %140 = arith.mulf %139, %100 : vector<2x128xf32>
    %141 = arith.subf %137, %140 : vector<2x128xf32>
    %cst_45 = arith.constant 5.000000e-01 : f32
    %142 = vector.broadcast %cst_45 : f32 to vector<2x128xf32>
    %143 = arith.mulf %142, %115 : vector<2x128xf32>
    %144 = arith.mulf %143, %102 : vector<2x128xf32>
    %145 = arith.subf %141, %144 : vector<2x128xf32>
    %cst_46 = arith.constant 7.500000e-01 : f32
    %146 = vector.broadcast %cst_46 : f32 to vector<2x128xf32>
    %147 = arith.mulf %146, %130 : vector<2x128xf32>
    %148 = arith.mulf %147, %98 : vector<2x128xf32>
    %149 = arith.subf %145, %148 : vector<2x128xf32>
    %cst_47 = arith.constant 1.000000e+00 : f32
    %150 = vector.broadcast %cst_47 : f32 to vector<2x128xf32>
    %151 = arith.mulf %149, %150 : vector<2x128xf32>
    %c3 = arith.constant 3 : index
    %c0_48 = arith.constant 0 : index
    %c0_49 = arith.constant 0 : index
    %c0_50 = arith.constant 0 : index
    %152 = vector.load %arg5[%c3, %c0_48, %c0_49, %c0_50] : memref<4x1x2x128xf32, #tpu.memory_space<vmem>>, vector<1x1x2x128xf32>
    %153 = vector.shape_cast %152 : vector<1x1x2x128xf32> to vector<2x128xf32>
    %154 = vector.shape_cast %151 : vector<2x128xf32> to vector<1x1x2x128xf32>
    tpu.vector_store %arg5[%c3, %c0_48, %c0_49, %c0_50], %154 {strides = array<i32>} : memref<4x1x2x128xf32, #tpu.memory_space<vmem>>, vector<1x1x2x128xf32>,
    return
  }
  func.func @transform_0(%arg0: i32) -> (i32, i32) {
    %c0_i32 = arith.constant 0 : i32
    %c0_i32_0 = arith.constant 0 : i32
    return %arg0, %c0_i32 : i32, i32
  }
  func.func @transform_1(%arg0: i32) -> (i32, i32) {
    %c0_i32 = arith.constant 0 : i32
    %c0_i32_0 = arith.constant 0 : i32
    %c0_i32_1 = arith.constant 0 : i32
    return %c0_i32, %c0_i32_0 : i32, i32
  }
  func.func @transform_2(%arg0: i32) -> (i32, i32) {
    %c0_i32 = arith.constant 0 : i32
    %c0_i32_0 = arith.constant 0 : i32
    %c0_i32_1 = arith.constant 0 : i32
    return %c0_i32, %c0_i32_0 : i32, i32
  }
  func.func @transform_3(%arg0: i32) -> (i32, i32) {
    %c0_i32 = arith.constant 0 : i32
    %c0_i32_0 = arith.constant 0 : i32
    %c0_i32_1 = arith.constant 0 : i32
    return %c0_i32, %c0_i32_0 : i32, i32
  }
  func.func @transform_4(%arg0: i32) -> (i32, i32, i32, i32) {
    %c0_i32 = arith.constant 0 : i32
    %c0_i32_0 = arith.constant 0 : i32
    %c0_i32_1 = arith.constant 0 : i32
    %c0_i32_2 = arith.constant 0 : i32
    return %c0_i32, %arg0, %c0_i32_0, %c0_i32_1 : i32, i32, i32, i32
  }
}

</mosaic_0001>

<llo_original>
// kernel: tpu_custom_call.1
$region0: #{tpu_custom_call.1}
  #allocation0 [shape = 'u32[]', space=smem, size = 0x4, offset = 0x4, fixed_abs, tag = 'smem constant byte address 0x4 - core index']
  #allocation1 [shape = 'u32[144,128]{1,0:T(1,128)}', space=vmem, size = 0x12000, scoped, tag = 'internal scratch']
  %s0 = inlined_call_operand.vmem [shape: f32[300,17], index: 0, kind: input, shape index: {}]
  %s1 = inlined_call_operand.vmem [shape: f32[8,17], index: 1, kind: input, shape index: {}]
  %s2 = inlined_call_operand.vmem [shape: f32[5,8], index: 2, kind: input, shape index: {}]
  %s3 = inlined_call_operand.vmem [shape: f32[8,1], index: 3, kind: input, shape index: {}]
  %s4 = inlined_call_operand.hbm [shape: f32[4,2,2,128], index: 4, kind: output, shape index: {}]
  %s5 = sld [smem:[#allocation0]]
  $region49: #{tpu_custom_call.1} parent=0
    _
  %s7 = ssub.s32 1, %s5
  %s8 = scalar_select 0, %s7, %s5
  $region1: #{tpu_custom_call.1} parent=0
    #allocation2 [shape = 'u8[8192]{0}', space=vmem, size = 0x2000, scoped, tag = 'output window, operand 0']
    #allocation3 [shape = 's32[2]{0}', space=sflag, size = 0x8, scoped, tag = 'scoped memory for tpu_custom_call.1']
    %9 = vsyncpa [#allocation3], 0
    %s10 = scalar_lea.sflag [#allocation3], 1
    %11 = vsyncpa %s10, 0
    loop: start=0, step=1, limit=4
    $region2: #{tpu_custom_call.1} parent=1 // loop_pre_header
      _
    $region3: #{tpu_custom_call.1} parent=1 // loop_header
      %s13 = sphi 0, %s17
      %p14 = scmp.ge.s32.totalorder %s13, 4
      %s23 = sphi 0, %s25
      %s26 = sphi 0, %s23
      %s27 = sphi 0, %s26
      %s43 = sphi 0, %s27
      %s47 = sphi 0, %s47
      %s49 = sphi 0, %s47
      %s50 = sphi 0, %s49
      %s64 = sphi 0, %s50
      %s68 = sphi 0, %s68
      %s70 = sphi 0, %s68
      %s71 = sphi 0, %s70
      %s85 = sphi 0, %s71
      %s89 = sphi 0, %s89
      %s91 = sphi 0, %s89
      %s92 = sphi 0, %s91
      %s106 = sphi 0, %s92
      %s112 = sphi 0, %s114
      %s115 = sphi 0, %s112
      %s116 = sphi 0, %s115
      %s132 = sphi 0, %s116
    $region4: #{tpu_custom_call.1} parent=1 // loop_header_branch
      %16 = sbr.rel (%p14) target = $region8
    $region5: #{tpu_custom_call.1} parent=1 // loop_body
      %s18 = ssub.s32 %s13, 1
      %s19 = ssub.s32 %s13, 2
      %s20 = sadd.s32 %s13, 1
      %s21 = ssub.s32 %s13, %s20
      %p22 = scmp.eq.s32.totalorder %s21, 0
      %s24 = sadd.s32 %s23, 1
      %s25 = scalar_select %p22, %s23, %s24
      %p28 = pneg %p22
      %p29 = scmp.eq.s32.totalorder %s13, 1
      %p30 = por %p28, %p29
      %p31 = scmp.ne.s32.totalorder %s23, %s26
      %p32 = scmp.eq.s32.totalorder %s13, 0
      %p33 = por %p31, %p32
      %p34 = scmp.ne.s32.totalorder %s23, %s26
      %p35 = scmp.eq.s32.totalorder %s18, 1
      %p36 = por %p34, %p35
      %p37 = scmp.ne.s32.totalorder %s26, %s27
      %p38 = scmp.eq.s32.totalorder %s18, 0
      %p39 = por %p37, %p38
      %p40 = scmp.ne.s32.totalorder %s26, %s27
      %p41 = scmp.eq.s32.totalorder %s19, 1
      %p42 = por %p40, %p41
      %p44 = scmp.ne.s32.totalorder %s27, %s43
      %p45 = scmp.eq.s32.totalorder %s19, 0
      %p46 = por %p44, %p45
      %s48 = sadd.s32 %s47, 1
      %p51 = scmp.eq.s32.totalorder %s13, 1
      %p52 = scmp.ne.s32.totalorder %s47, %s49
      %p53 = scmp.eq.s32.totalorder %s13, 0
      %p54 = por %p52, %p53
      %p55 = scmp.ne.s32.totalorder %s47, %s49
      %p56 = scmp.eq.s32.totalorder %s18, 1
      %p57 = por %p55, %p56
      %p58 = scmp.ne.s32.totalorder %s49, %s50
      %p59 = scmp.eq.s32.totalorder %s18, 0
      %p60 = por %p58, %p59
      %p61 = scmp.ne.s32.totalorder %s49, %s50
      %p62 = scmp.eq.s32.totalorder %s19, 1
      %p63 = por %p61, %p62
      %p65 = scmp.ne.s32.totalorder %s50, %s64
      %p66 = scmp.eq.s32.totalorder %s19, 0
      %p67 = por %p65, %p66
      %s69 = sadd.s32 %s68, 1
      %p72 = scmp.eq.s32.totalorder %s13, 1
      %p73 = scmp.ne.s32.totalorder %s68, %s70
      %p74 = scmp.eq.s32.totalorder %s13, 0
      %p75 = por %p73, %p74
      %p76 = scmp.ne.s32.totalorder %s68, %s70
      %p77 = scmp.eq.s32.totalorder %s18, 1
      %p78 = por %p76, %p77
      %p79 = scmp.ne.s32.totalorder %s70, %s71
      %p80 = scmp.eq.s32.totalorder %s18, 0
      %p81 = por %p79, %p80
      %p82 = scmp.ne.s32.totalorder %s70, %s71
      %p83 = scmp.eq.s32.totalorder %s19, 1
      %p84 = por %p82, %p83
      %p86 = scmp.ne.s32.totalorder %s71, %s85
      %p87 = scmp.eq.s32.totalorder %s19, 0
      %p88 = por %p86, %p87
      %s90 = sadd.s32 %s89, 1
      %p93 = scmp.eq.s32.totalorder %s13, 1
      %p94 = scmp.ne.s32.totalorder %s89, %s91
      %p95 = scmp.eq.s32.totalorder %s13, 0
      %p96 = por %p94, %p95
      %p97 = scmp.ne.s32.totalorder %s89, %s91
      %p98 = scmp.eq.s32.totalorder %s18, 1
      %p99 = por %p97, %p98
      %p100 = scmp.ne.s32.totalorder %s91, %s92
      %p101 = scmp.eq.s32.totalorder %s18, 0
      %p102 = por %p100, %p101
      %p103 = scmp.ne.s32.totalorder %s91, %s92
      %p104 = scmp.eq.s32.totalorder %s19, 1
      %p105 = por %p103, %p104
      %p107 = scmp.ne.s32.totalorder %s92, %s106
      %p108 = scmp.eq.s32.totalorder %s19, 0
      %p109 = por %p107, %p108
      %s110 = ssub.s32 %s13, %s20
      %p111 = scmp.eq.s32.totalorder %s110, 0
      %s113 = sadd.s32 %s112, 1
      %s114 = scalar_select %p111, %s112, %s113
      %p117 = pneg %p111
      %p118 = scmp.eq.s32.totalorder %s13, 1
      %p119 = por %p117, %p118
      %p120 = scmp.ne.s32.totalorder %s112, %s115
      %p121 = scmp.eq.s32.totalorder %s13, 0
      %p122 = por %p120, %p121
      %p123 = scmp.ne.s32.totalorder %s112, %s115
      %p124 = scmp.eq.s32.totalorder %s18, 1
      %p125 = por %p123, %p124
      %p126 = scmp.ne.s32.totalorder %s115, %s116
      %p127 = scmp.eq.s32.totalorder %s18, 0
      %p128 = por %p126, %p127
      %p129 = scmp.ne.s32.totalorder %s115, %s116
      %p130 = scmp.eq.s32.totalorder %s19, 1
      %p131 = por %p129, %p130
      %p133 = scmp.ne.s32.totalorder %s116, %s132
      %p134 = scmp.eq.s32.totalorder %s19, 0
      %p135 = por %p133, %p134
      %p136 = scmp.le.s32.totalorder 1, %s13
      %p137 = scmp.lt.s32.totalorder %s13, 3
      %p138 = pnand %p136, %p137
      %p139 = pneg %p138
      // Predicated region
      $region9: #{tpu_custom_call.1} parent=5 // pred_check
        _
      $region10: #{tpu_custom_call.1} parent=5 // pred_check_branch
        %141 = sbr.rel (%p138) target = $region12
      $region11: #{tpu_custom_call.1} parent=5 // pred_region
        %s142 = ssub.s32 %s13, 1
        // Predicated region
        $region13: #{tpu_custom_call.1} parent=11 // pred_check
          %p143 = pneg %p60
        $region14: #{tpu_custom_call.1} parent=11 // pred_check_branch
          %145 = sbr.rel (%p143) target = $region16
        $region15: #{tpu_custom_call.1} parent=11 // pred_region
          _
        $region16: #{tpu_custom_call.1} parent=11 // pred_fallthru
          _
        // Predicated region
        $region17: #{tpu_custom_call.1} parent=11 // pred_check
          %p146 = pneg %p81
        $region18: #{tpu_custom_call.1} parent=11 // pred_check_branch
          %148 = sbr.rel (%p146) target = $region20
        $region19: #{tpu_custom_call.1} parent=11 // pred_region
          _
        $region20: #{tpu_custom_call.1} parent=11 // pred_fallthru
          _
        // Predicated region
        $region21: #{tpu_custom_call.1} parent=11 // pred_check
          %p149 = pneg %p102
        $region22: #{tpu_custom_call.1} parent=11 // pred_check_branch
          %151 = sbr.rel (%p149) target = $region24
        $region23: #{tpu_custom_call.1} parent=11 // pred_region
          _
        $region24: #{tpu_custom_call.1} parent=11 // pred_fallthru
          _
      $region12: #{tpu_custom_call.1} parent=5 // pred_fallthru
        _
      %p152 = scmp.lt.s32.totalorder %s13, 2
      // Predicated region
      $region25: #{tpu_custom_call.1} parent=5 // pred_check
        %p153 = pneg %p152
      $region26: #{tpu_custom_call.1} parent=5 // pred_check_branch
        %155 = sbr.rel (%p153) target = $region28
      $region27: #{tpu_custom_call.1} parent=5 // pred_region
        // Predicated region
        $region29: #{tpu_custom_call.1} parent=27 // pred_check
          %p156 = pneg %p33
        $region30: #{tpu_custom_call.1} parent=27 // pred_check_branch
          %158 = sbr.rel (%p156) target = $region32
        $region31: #{tpu_custom_call.1} parent=27 // pred_region
          %s159 = smul.u32 32, %s13
          %s160 = ssub.s32 38, %s159
          %p161 = scmp.lt.s32.totalorder %s160, 32
          %s162 = scalar_select %p161, %s160, 32
          %s163 = smul.u32 128, %s162
          %p164 = scmp.lt.s32.totalorder %s159, 37
          %s165 = scalar_select %p164, %s159, 37
          %s166 = smul.addr %s165, 8
          %s167 = scalar_lea.vmem %s0, %s166
          %s168 = smul.u32 32, %s13
          %s169 = ssub.s32 38, %s168
          %p170 = scmp.lt.s32.totalorder %s169, 32
          %s171 = scalar_select %p170, %s169, 32
          %s172 = smul.u32 128, %s171
        $region32: #{tpu_custom_call.1} parent=27 // pred_fallthru
          _
      $region28: #{tpu_custom_call.1} parent=5 // pred_fallthru
        _
      %p173 = scmp.le.s32.totalorder 1, %s13
      %p174 = scmp.lt.s32.totalorder %s13, 3
      %p175 = pnand %p173, %p174
      %p176 = pneg %p175
      // Predicated region
      $region33: #{tpu_custom_call.1} parent=5 // pred_check
        _
      $region34: #{tpu_custom_call.1} parent=5 // pred_check_branch
        %178 = sbr.rel (%p175) target = $region36
      $region35: #{tpu_custom_call.1} parent=5 // pred_region
        %s179 = ssub.s32 %s13, 1
        %s180 = smul.u32 32, %s18
        %s181 = ssub.s32 38, %s180
        %p182 = scmp.lt.s32.totalorder %s181, 32
        %s183 = scalar_select %p182, %s181, 32
        %s184 = smul.u32 128, %s183
        %p185 = scmp.lt.s32.totalorder %s180, 37
        %s186 = scalar_select %p185, %s180, 37
        %s187 = smul.addr %s186, 8
        %s188 = scalar_lea.vmem %s0, %s187
        %p189 = pneg %p39
        %p190 = pneg %p36
        %p191 = pneg %p60
        %p192 = pneg %p57
        %p193 = pneg %p81
        %p194 = pneg %p78
        %p195 = pneg %p102
        %p196 = pneg %p99
        %p197 = pneg %p128
        %p198 = pneg %p125
        %s199 = sand.u32 %s115, 1
        %s200 = scalar_lea.sflag [#allocation3], %s199
        %s201 = sand.u32 %s115, 1
        %s202 = smul.addr %s201, 8
        %s203 = scalar_lea.vmem [#allocation2], %s202
        %s204 = smul.u32 32, %s18
        %s205 = ssub.s32 38, %s204
        %p206 = scmp.lt.s32.totalorder %s205, 32
        %s207 = scalar_select %p206, %s205, 32
        %s208 = smul.u32 128, %s207
        %p209 = scmp.lt.s32.totalorder %s204, 37
        %s210 = scalar_select %p209, %s204, 37
        %s211 = smul.addr %s210, 8
        %s212 = scalar_lea.vmem %s0, %s211
        %s213 = smul.u32 32, %s18
        %s214 = ssub.s32 38, %s213
        %p215 = scmp.lt.s32.totalorder %s214, 32
        %s216 = scalar_select %p215, %s214, 32
        %s217 = smul.u32 128, %s216
        %v218 = vld [vmem:[%s212] sm:$0xff]
        %v219 = vld [vmem:[%s212 + $0x8] sm:$0xff]
        %v220 = vld [vmem:[%s212 + $0x10] sm:$0xff]
        %v221 = vld [vmem:[%s212 + $0x18] sm:$0xff]
        %v222 = vld [vmem:[%s212 + $0x20] sm:$0xff]
        %v223 = vld [vmem:[%s212 + $0x28] sm:$0xff]
        %v224 = vld [vmem:[%s212 + $0x30] sm:$0xff]
        %v225 = vld [vmem:[%s212 + $0x38] sm:$0xff]
        %v226 = vld [vmem:[%s212 + $0x40] sm:$0xff]
        %v227 = vld [vmem:[%s212 + $0x48] sm:$0xff]
        %v228 = vld [vmem:[%s212 + $0x50] sm:$0xff]
        %v229 = vld [vmem:[%s212 + $0x58] sm:$0xff]
        %v230 = vld [vmem:[%s212 + $0x60] sm:$0xff]
        %v231 = vld [vmem:[%s212 + $0x68] sm:$0xff]
        %v232 = vld [vmem:[%s212 + $0x70] sm:$0xff]
        %v233 = vld [vmem:[%s212 + $0x78] sm:$0xff]
        %v234 = vld [vmem:[%s212 + $0x80] sm:$0xff]
        %v235 = vld [vmem:[%s212 + $0x88] sm:$0xff]
        %v236 = vld [vmem:[%s212 + $0x90] sm:$0xff]
        %v237 = vld [vmem:[%s212 + $0x98] sm:$0xff]
        %v238 = vld [vmem:[%s212 + $0xa0] sm:$0xff]
        %v239 = vld [vmem:[%s212 + $0xa8] sm:$0xff]
        %v240 = vld [vmem:[%s212 + $0xb0] sm:$0xff]
        %v241 = vld [vmem:[%s212 + $0xb8] sm:$0xff]
        %v242 = vld [vmem:[%s212 + $0xc0] sm:$0xff]
        %v243 = vld [vmem:[%s212 + $0xc8] sm:$0xff]
        %v244 = vld [vmem:[%s212 + $0xd0] sm:$0xff]
        %v245 = vld [vmem:[%s212 + $0xd8] sm:$0xff]
        %v246 = vld [vmem:[%s212 + $0xe0] sm:$0xff]
        %v247 = vld [vmem:[%s212 + $0xe8] sm:$0xff]
        %v248 = vld [vmem:[%s212 + $0xf0] sm:$0xff]
        %v249 = vld [vmem:[%s212 + $0xf8] sm:$0xff]
        %v250 = vld [vmem:[%s1] sm:$0xff]
        %vm251 = vcmask 138240
        %v253 = vsel %vm251, %v250, 0
        %v256 = vsel %vm251, %v218, 0
        %v259 = vsel %vm251, %v219, 0
        %v262 = vsel %vm251, %v220, 0
        %v265 = vsel %vm251, %v221, 0
        %v268 = vsel %vm251, %v222, 0
        %v271 = vsel %vm251, %v223, 0
        %v274 = vsel %vm251, %v224, 0
        %v277 = vsel %vm251, %v225, 0
        %v280 = vsel %vm251, %v226, 0
        %v283 = vsel %vm251, %v227, 0
        %v286 = vsel %vm251, %v228, 0
        %v289 = vsel %vm251, %v229, 0
        %v292 = vsel %vm251, %v230, 0
        %v295 = vsel %vm251, %v231, 0
        %v298 = vsel %vm251, %v232, 0
        %v301 = vsel %vm251, %v233, 0
        %v304 = vsel %vm251, %v234, 0
        %v307 = vsel %vm251, %v235, 0
        %v310 = vsel %vm251, %v236, 0
        %v313 = vsel %vm251, %v237, 0
        %v316 = vsel %vm251, %v238, 0
        %v319 = vsel %vm251, %v239, 0
        %v322 = vsel %vm251, %v240, 0
        %v325 = vsel %vm251, %v241, 0
        %v328 = vsel %vm251, %v242, 0
        %v331 = vsel %vm251, %v243, 0
        %v334 = vsel %vm251, %v244, 0
        %v337 = vsel %vm251, %v245, 0
        %v340 = vsel %vm251, %v246, 0
        %v343 = vsel %vm251, %v247, 0
        %v346 = vsel %vm251, %v248, 0
        %v349 = vsel %vm251, %v249, 0
        %351 = vmatprep.subr.mxu0 0.0
        %352 = vmatpush1.xpose.msra.mxu0 %v301
        %353 = vmatprep.subr.mxu0 0.0
        %354 = vmatpush1.xpose.msra.mxu0 %v298
        %355 = vmatprep.subr.mxu0 0.0
        %356 = vmatpush1.xpose.msra.mxu0 %v295
        %357 = vmatprep.subr.mxu0 0.0
        %358 = vmatpush1.xpose.msra.mxu0 %v292
        %359 = vmatprep.subr.mxu0 0.0
        %360 = vmatpush1.xpose.msra.mxu0 %v289
        %361 = vmatprep.subr.mxu0 0.0
        %362 = vmatpush1.xpose.msra.mxu0 %v286
        %363 = vmatprep.subr.mxu0 0.0
        %364 = vmatpush1.xpose.msra.mxu0 %v283
        %365 = vmatprep.subr.mxu0 0.0
        %366 = vmatpush1.xpose.msra.mxu0 %v280
        %367 = vmatprep.subr.mxu0 0.0
        %368 = vmatpush1.xpose.msra.mxu0 %v277
        %369 = vmatprep.subr.mxu0 0.0
        %370 = vmatpush1.xpose.msra.mxu0 %v274
        %371 = vmatprep.subr.mxu0 0.0
        %372 = vmatpush1.xpose.msra.mxu0 %v271
        %373 = vmatprep.subr.mxu0 0.0
        %374 = vmatpush1.xpose.msra.mxu0 %v268
        %375 = vmatprep.subr.mxu0 0.0
        %376 = vmatpush1.xpose.msra.mxu0 %v265
        %377 = vmatprep.subr.mxu0 0.0
        %378 = vmatpush1.xpose.msra.mxu0 %v262
        %379 = vmatprep.subr.mxu0 0.0
        %380 = vmatpush1.xpose.msra.mxu0 %v259
        %381 = vmatprep.subr.mxu0 0.0
        %382 = vmatpush1.xpose.msra.mxu0 %v256
        %383 = vmatprep.subr.mxu0 0.0
        %384 = vmatpush2.xpose.msra.mxu0 %v349
        %385 = vmatprep.subr.mxu0 0.0
        %386 = vmatpush2.xpose.msra.mxu0 %v346
        %387 = vmatprep.subr.mxu0 0.0
        %388 = vmatpush2.xpose.msra.mxu0 %v343
        %389 = vmatprep.subr.mxu0 0.0
        %390 = vmatpush2.xpose.msra.mxu0 %v340
        %391 = vmatprep.subr.mxu0 0.0
        %392 = vmatpush2.xpose.msra.mxu0 %v337
        %393 = vmatprep.subr.mxu0 0.0
        %394 = vmatpush2.xpose.msra.mxu0 %v334
        %395 = vmatprep.subr.mxu0 0.0
        %396 = vmatpush2.xpose.msra.mxu0 %v331
        %397 = vmatprep.subr.mxu0 0.0
        %398 = vmatpush2.xpose.msra.mxu0 %v328
        %399 = vmatprep.subr.mxu0 0.0
        %400 = vmatpush2.xpose.msra.mxu0 %v325
        %401 = vmatprep.subr.mxu0 0.0
        %402 = vmatpush2.xpose.msra.mxu0 %v322
        %403 = vmatprep.subr.mxu0 0.0
        %404 = vmatpush2.xpose.msra.mxu0 %v319
        %405 = vmatprep.subr.mxu0 0.0
        %406 = vmatpush2.xpose.msra.mxu0 %v316
        %407 = vmatprep.subr.mxu0 0.0
        %408 = vmatpush2.xpose.msra.mxu0 %v313
        %409 = vmatprep.subr.mxu0 0.0
        %410 = vmatpush2.xpose.msra.mxu0 %v310
        %411 = vmatprep.subr.mxu0 0.0
        %412 = vmatpush2.xpose.msra.mxu0 %v307
        %413 = vmatprep.subr.mxu0 0.0
        %414 = vmatpush2.xpose.msra.mxu0 %v304
        %415 = vmatprep.mubr.f32.mxu0 0.0
        %416 = vmatmul.mubr.f32.gmra.mxu0 %v253
        %v417 = vpop.f32.mrf.mxu0
        %v418 = vadd.f32 0.0, %v417
        %v419 = vpop.f32.mrf.mxu0
        %v420 = vadd.f32 0.0, %v419
        %421 = vdwg.mxu0
        %v422 = vld [vmem:[%s3] sm:$0xff]
        %424 = vset.pattern.permute.xlu0 0
        %425 = vperm.xlu0 %424, %v422
        %v426 = vpop.permute.xlu0 %425
        %v428 = vmax.f32 %v418, %v426
        %v429 = vmax.f32 %v420, %v426
        %v430 = vlog2.pop %v428
        %v431 = vmul.f32 %v430, 0.6931472
        %v432 = vlog2.pop %v429
        %v433 = vmul.f32 %v432, 0.6931472
        %v434 = vmul.f32 %v431, 0.33
        %v435 = vmul.f32 %v433, 0.33
        %v436 = vmul.f32 %v434, 1.442695
        %v437 = vpow.pop %v436
        %v438 = vmul.f32 %v435, 1.442695
        %v439 = vpow.pop %v438
        %v440 = vld [vmem:[%s2] sm:$0x1f]
        %vm441 = vcmask 64512
        %v443 = vsel %vm441, %v440, 0
        %445 = vmatprep.subr.mxu0 0.0
        %446 = vmatpush1.msra.mxu0 0.0
        %447 = vmatprep.subr.mxu0 0.0
        %448 = vmatpush1.msra.mxu0 0.0
        %449 = vmatprep.subr.mxu0 0.0
        %450 = vmatpush1.msra.mxu0 0.0
        %451 = vmatprep.subr.mxu0 0.0
        %452 = vmatpush1.msra.mxu0 0.0
        %453 = vmatprep.subr.mxu0 0.0
        %454 = vmatpush1.msra.mxu0 0.0
        %455 = vmatprep.subr.mxu0 0.0
        %456 = vmatpush1.msra.mxu0 0.0
        %457 = vmatprep.subr.mxu0 0.0
        %458 = vmatpush1.msra.mxu0 0.0
        %459 = vmatprep.subr.mxu0 0.0
        %460 = vmatpush1.msra.mxu0 0.0
        %461 = vmatprep.subr.mxu0 0.0
        %462 = vmatpush1.msra.mxu0 0.0
        %463 = vmatprep.subr.mxu0 0.0
        %464 = vmatpush1.msra.mxu0 0.0
        %465 = vmatprep.subr.mxu0 0.0
        %466 = vmatpush1.msra.mxu0 0.0
        %467 = vmatprep.subr.mxu0 0.0
        %468 = vmatpush1.msra.mxu0 0.0
        %469 = vmatprep.subr.mxu0 0.0
        %470 = vmatpush1.msra.mxu0 0.0
        %471 = vmatprep.subr.mxu0 0.0
        %472 = vmatpush1.msra.mxu0 0.0
        %473 = vmatprep.subr.mxu0 0.0
        %474 = vmatpush1.msra.mxu0 0.0
        %475 = vmatprep.subr.mxu0 %v439
        %476 = vmatpush1.msra.mxu0 %v437
        %477 = vmatprep.subr.mxu0 0.0
        %478 = vmatpush2.msra.mxu0 0.0
        %479 = vmatprep.subr.mxu0 0.0
        %480 = vmatpush2.msra.mxu0 0.0
        %481 = vmatprep.subr.mxu0 0.0
        %482 = vmatpush2.msra.mxu0 0.0
        %483 = vmatprep.subr.mxu0 0.0
        %484 = vmatpush2.msra.mxu0 0.0
        %485 = vmatprep.subr.mxu0 0.0
        %486 = vmatpush2.msra.mxu0 0.0
        %487 = vmatprep.subr.mxu0 0.0
        %488 = vmatpush2.msra.mxu0 0.0
        %489 = vmatprep.subr.mxu0 0.0
        %490 = vmatpush2.msra.mxu0 0.0
        %491 = vmatprep.subr.mxu0 0.0
        %492 = vmatpush2.msra.mxu0 0.0
        %493 = vmatprep.subr.mxu0 0.0
        %494 = vmatpush2.msra.mxu0 0.0
        %495 = vmatprep.subr.mxu0 0.0
        %496 = vmatpush2.msra.mxu0 0.0
        %497 = vmatprep.subr.mxu0 0.0
        %498 = vmatpush2.msra.mxu0 0.0
        %499 = vmatprep.subr.mxu0 0.0
        %500 = vmatpush2.msra.mxu0 0.0
        %501 = vmatprep.subr.mxu0 0.0
        %502 = vmatpush2.msra.mxu0 0.0
        %503 = vmatprep.subr.mxu0 0.0
        %504 = vmatpush2.msra.mxu0 0.0
        %505 = vmatprep.subr.mxu0 0.0
        %506 = vmatpush2.msra.mxu0 0.0
        %507 = vmatprep.subr.mxu0 0.0
        %508 = vmatpush2.msra.mxu0 0.0
        %509 = vmatprep.mubr.f32.mxu0 0.0
        %510 = vmatmul.mubr.f32.gmra.mxu0 %v443
        %v511 = vpop.f32.mrf.mxu0
        %v512 = vadd.f32 0.0, %v511
        %v513 = vpop.f32.mrf.mxu0
        %v514 = vadd.f32 0.0, %v513
        %515 = vdwg.mxu0
        %v517 = vrot.slane %v514, 7
        %vm519 = vcmask 1040384
        %v520 = vsel %vm519, %v512, %v517
        %v522 = vrot.slane %v512, 1
        %v524 = vsel %vm519, %v522, %v514
        %v525 = vrot.slane %v512, 2
        %v527 = vrot.slane %v514, 1
        %v529 = vsel %vm519, %v525, %v527
        %v530 = vrot.slane %v512, 3
        %v532 = vrot.slane %v514, 2
        %v534 = vsel %vm519, %v530, %v532
        %v535 = vrot.slane %v512, 4
        %v537 = vrot.slane %v514, 3
        %v539 = vsel %vm519, %v535, %v537
        %v540 = vsub.f32 0.0, %v524
        %v541 = vmax.f32 %v520, 1e-30
        %v542 = vrcp.pop %v541
        %v543 = vmul.f32 %v541, %v542
        %v544 = vsub.f32 2.0, %v543
        %v545 = vmul.f32 %v542, %v544
        %v546 = vmul.f32 %v540, %v545
        %v547 = vmul.f32 %v546, %v546
        %v548 = vsub.f32 1.0, %v547
        %v549 = vmul.f32 %v520, %v548
        %v550 = vmul.f32 %v546, %v524
        %v551 = vadd.f32 %v529, %v550
        %v552 = vsub.f32 0.0, %v551
        %v553 = vmax.f32 %v549, 1e-30
        %v554 = vrcp.pop %v553
        %v555 = vmul.f32 %v553, %v554
        %v556 = vsub.f32 2.0, %v555
        %v557 = vmul.f32 %v554, %v556
        %v558 = vmul.f32 %v552, %v557
        %v559 = vmul.f32 %v558, %v546
        %v560 = vadd.f32 %v546, %v559
        %v561 = vmul.f32 %v558, %v558
        %v562 = vsub.f32 1.0, %v561
        %v563 = vmul.f32 %v549, %v562
        %v564 = vmul.f32 %v560, %v529
        %v565 = vadd.f32 %v534, %v564
        %v566 = vmul.f32 %v558, %v524
        %v567 = vadd.f32 %v565, %v566
        %v568 = vsub.f32 0.0, %v567
        %v569 = vmax.f32 %v563, 1e-30
        %v570 = vrcp.pop %v569
        %v571 = vmul.f32 %v569, %v570
        %v572 = vsub.f32 2.0, %v571
        %v573 = vmul.f32 %v570, %v572
        %v574 = vmul.f32 %v568, %v573
        %v575 = vmul.f32 %v574, %v558
        %v576 = vadd.f32 %v560, %v575
        %v577 = vmul.f32 %v574, %v560
        %v578 = vadd.f32 %v558, %v577
        %v579 = vmul.f32 %v574, %v574
        %v580 = vsub.f32 1.0, %v579
        %v581 = vmul.f32 %v563, %v580
        %v582 = vmul.f32 %v576, %v534
        %v583 = vadd.f32 %v539, %v582
        %v584 = vmul.f32 %v578, %v529
        %v585 = vadd.f32 %v583, %v584
        %v586 = vmul.f32 %v574, %v524
        %v587 = vadd.f32 %v585, %v586
        %v588 = vsub.f32 0.0, %v587
        %v589 = vmax.f32 %v581, 1e-30
        %v590 = vrcp.pop %v589
        %v591 = vmul.f32 %v589, %v590
        %v592 = vsub.f32 2.0, %v591
        %v593 = vmul.f32 %v590, %v592
        %v594 = vmul.f32 %v588, %v593
        %v595 = vmul.f32 %v594, %v574
        %v596 = vadd.f32 %v576, %v595
        %v597 = vmul.f32 %v594, %v576
        %v598 = vadd.f32 %v574, %v597
        %v599 = vmul.f32 %v594, %v578
        %v600 = vadd.f32 %v578, %v599
        %v601 = vsub.f32 0.0, %v596
        %602 = vst [vmem:[%s203] sm:$0x3] %v601
        %v603 = vsub.f32 0.0, %v600
        %v604 = vmul.f32 %v601, 0.5
        %v605 = vmul.f32 %v604, %v596
        %v606 = vsub.f32 %v603, %v605
        %s607 = scalar_lea.vmem %s203, 2 [#allocation2]
        %608 = vst [vmem:[%s607] sm:$0x3] %v606
        %v609 = vsub.f32 0.0, %v598
        %v610 = vmul.f32 %v601, 0.33333334
        %v611 = vmul.f32 %v610, %v600
        %v612 = vsub.f32 %v609, %v611
        %v613 = vmul.f32 %v606, 0.6666667
        %v614 = vmul.f32 %v613, %v596
        %v615 = vsub.f32 %v612, %v614
        %s616 = scalar_lea.vmem %s203, 4 [#allocation2]
        %617 = vst [vmem:[%s616] sm:$0x3] %v615
        %v618 = vsub.f32 0.0, %v594
        %v619 = vmul.f32 %v601, 0.25
        %v620 = vmul.f32 %v619, %v598
        %v621 = vsub.f32 %v618, %v620
        %v622 = vmul.f32 %v606, 0.5
        %v623 = vmul.f32 %v622, %v600
        %v624 = vsub.f32 %v621, %v623
        %v625 = vmul.f32 %v615, 0.75
        %v626 = vmul.f32 %v625, %v596
        %v627 = vsub.f32 %v624, %v626
        %s628 = scalar_lea.vmem %s203, 6 [#allocation2]
        %629 = vst [vmem:[%s628] sm:$0x3] %v627
        %s630 = sand.u32 %s115, 1
        %s631 = scalar_lea.sflag [#allocation3], %s630
        %s632 = sand.u32 %s115, 1
        %s633 = smul.addr %s632, 8
        %s634 = scalar_lea.vmem [#allocation2], %s633
        // Predicated region
        $region37: #{tpu_custom_call.1} parent=35 // pred_check
          %p635 = pneg %p125
        $region38: #{tpu_custom_call.1} parent=35 // pred_check_branch
          %637 = sbr.rel (%p635) target = $region40
        $region39: #{tpu_custom_call.1} parent=35 // pred_region
          %s639 = ssub.s32 128, 128
          %640 = vsyncadd %s631, %s639
          %s641 = smul.addr %s18, 32
          %s642 = scalar_lea.hbm %s4, %s641
          %s643 = sshll.u32 %s634, 4
          %s644 = int_to_ptr.vmem [resolvable:$true] %s643
          %649 = dma.vmem_to_hbm [thread:$0]  %s644, 128, %s642, %s631, 32, 64, 2
        $region40: #{tpu_custom_call.1} parent=35 // pred_fallthru
          _
      $region36: #{tpu_custom_call.1} parent=5 // pred_fallthru
        _
      %p650 = scmp.le.s32.totalorder 2, %s13
      // Predicated region
      $region41: #{tpu_custom_call.1} parent=5 // pred_check
        %p651 = pneg %p650
      $region42: #{tpu_custom_call.1} parent=5 // pred_check_branch
        %653 = sbr.rel (%p651) target = $region44
      $region43: #{tpu_custom_call.1} parent=5 // pred_region
        %s654 = ssub.s32 %s13, 2
        // Predicated region
        $region45: #{tpu_custom_call.1} parent=43 // pred_check
          %p655 = pneg %p131
        $region46: #{tpu_custom_call.1} parent=43 // pred_check_branch
          %657 = sbr.rel (%p655) target = $region48
        $region47: #{tpu_custom_call.1} parent=43 // pred_region
          %s658 = sand.u32 %s116, 1
          %s659 = scalar_lea.sflag [#allocation3], %s658
          %s660 = sand.u32 %s116, 1
          %s661 = smul.addr %s660, 8
          %s662 = scalar_lea.vmem [#allocation2], %s661
          %663 = dma.done %s659, 128
        $region48: #{tpu_custom_call.1} parent=43 // pred_fallthru
          _
      $region44: #{tpu_custom_call.1} parent=5 // pred_fallthru
        _
    $region6: #{tpu_custom_call.1} parent=1 // loop_footer
      %s17 = sadd.s32 1, %s13
    $region7: #{tpu_custom_call.1} parent=1 // loop_footer_branch
      %12 = sbr.rel target = $region3
    $region8: #{tpu_custom_call.1} parent=1 // loop_exit
      _
    %664 = vsyncpa [#allocation3], 1
    %s665 = scalar_lea.sflag [#allocation3], 1
    %666 = vsyncpa %s665, 1

</llo_original>
